<compile_context>
chip_gen: v7x
topology: tpu7x:2x2x1
jax: 0.10.0
libtpu: 0.0.40
codegen_flags: <defaults>
</compile_context>

<pallas_src>
import functools
from typing import NamedTuple

import jax
import jax.numpy as jnp
from jax.experimental import pallas as pl
from jax.experimental.pallas import tpu as pltpu


# ----------------------------------------------------------------------------
# Pallas kernel: fused gather(one-hot) + merged Linear + ReLU + folded-BN MLP
# ----------------------------------------------------------------------------
def _prefs_kernel(
    c_mode0,        # static: lane offset of the transport-mode one-hot block
    c_time0,        # static: lane offset of the 6 timestamp lanes
    c_bias_k,       # static: constant-1 bias lane of x_cat (folds b1)
    c_bias_h,       # static: constant-1 bias lane of h     (folds b2 + BNs)
    ids_ref,        # (BB, 2)      int32: [:,0]=user_id, [:,1]=transport_mode
    ts_ref,         # (BB, 8)      f32: 6 timestamp features + 2 pad cols
    wcat_ref,       # (K_pad, H_pad)  folded first-layer weight (resident)
    w2_ref,         # (H_pad, OUT_pad) second Linear w/ both BNs + b2 folded
    out_ref,        # (BB, OUT_pad)
):
    dt = wcat_ref.dtype
    bb = ids_ref.shape[0]
    k_pad = wcat_ref.shape[0]

    ids = ids_ref[...]                       # (BB, 2) int32
    uid = ids[:, 0:1]
    mid = ids[:, 1:2]
    ts = ts_ref[...]                         # (BB, 8) f32

    # Build x_cat in registers (no padded HBM activation stream):
    #   lanes [0, NU)            : one-hot(user_id)
    #   lanes [NU, NU+NM)        : one-hot(transport_mode)
    #   lanes [NU+NM, NU+NM+6)   : timestamp (lane-compare selects, pure VPU)
    #   lane   NU+NM+6           : constant 1.0 (b1/b_time bias lane)
    #   remaining lanes          : 0
    lane = jax.lax.broadcasted_iota(jnp.int32, (bb, k_pad), dimension=1)
    x = (lane == uid).astype(jnp.float32)
    x = x + (lane == (mid + c_mode0)).astype(jnp.float32)
    x = x + (lane == c_bias_k).astype(jnp.float32)
    for j in range(6):
        x = x + (lane == (c_time0 + j)).astype(jnp.float32) * ts[:, j:j + 1]

    # Merged Linear (embedding gathers + time-Linear + b1 folded into w_cat).
    h = jnp.dot(x.astype(dt), wcat_ref[...], preferred_element_type=jnp.float32)
    h = jnp.maximum(h, 0.0)                  # ReLU

    # Constant-1 lane selects the bias ROW of w2f (b2 + BN1/BN2 folded in),
    # so the epilogue is a single MXU dot + store.
    lane_h = jax.lax.broadcasted_iota(jnp.int32, h.shape, dimension=1)
    h = h + (lane_h == c_bias_h).astype(h.dtype)

    out_ref[...] = jnp.dot(
        h.astype(dt), w2_ref[...], preferred_element_type=jnp.float32
    ).astype(out_ref.dtype)


def _round_up(x, m):
    return (x + m - 1) // m * m


def _pick_batch_block(batch):
    """Batch block (BB) and padded batch (B_pad)."""
    b8 = _round_up(batch, 8)
    if b8 <= 256:
        return b8, b8                       # single step: step overhead dominates
    # Large batch: 128-multiple block, capped at 512, and >= 2 grid steps so
    # both v7x TensorCores get work under dimension_semantics=("parallel",).
    bb = min(512, _round_up((b8 + 1) // 2, 128))
    return bb, _round_up(b8, bb)


class PrefsMeta(NamedTuple):
    num_users: int
    num_modes: int
    out_dim: int
    k_pad: int
    h_pad: int
    out_pad: int


# ----------------------------------------------------------------------------
# One-time parameter folding + lane-dense padding (outside the per-call jit)
# ----------------------------------------------------------------------------
def prepare_params(params, compute_dtype=jnp.float32):
    f32 = jnp.float32
    eps = 1e-5
    NU, S = params["user_table"].shape
    NM = params["mode_table"].shape[0]
    P = params["w2"].shape[0]

    # Fold embedding gathers / time-Linear / b1 into one concatenated weight.
    w1 = params["w1"].T.astype(f32)                          # (3S, P): x @ W layout
    w1u, w1m, w1t = w1[:S], w1[S:2 * S], w1[2 * S:]
    u_proj = params["user_table"].astype(f32) @ w1u          # (NU, P)
    m_proj = params["mode_table"].astype(f32) @ w1m          # (NM, P)
    t_proj = params["w_time"].T.astype(f32) @ w1t            # (6, P)
    b1f = params["b1"].astype(f32) + params["b_time"].astype(f32) @ w1t

    # Fold both eval-mode BatchNorms and b2 into the second Linear.
    bn1_scale = params["bn1_gamma"] / jnp.sqrt(params["bn1_var"] + eps)
    bn1_shift = params["bn1_beta"] - params["bn1_mean"] * bn1_scale
    bn2_scale = params["bn2_gamma"] / jnp.sqrt(params["bn2_var"] + eps)
    bn2_shift = params["bn2_beta"] - params["bn2_mean"] * bn2_scale
    w2t = params["w2"].T.astype(f32)                                   # (P, P)
    w2f = bn1_scale[:, None] * w2t * bn2_scale[None, :]                # (P, P)
    b2f = (bn1_shift @ w2t + params["b2"].astype(f32)) * bn2_scale + bn2_shift

    c_mode0, c_time0 = NU, NU + NM
    c_bias_k = NU + NM + 6                          # bias lane of x_cat
    K_pad = _round_up(c_bias_k + 1, 128)
    H_pad = _round_up(P + 1, 128)                   # hidden lanes + bias lane
    OUT_pad = _round_up(P, 128)

    w_cat = jnp.zeros((K_pad, H_pad), f32)
    w_cat = w_cat.at[0:NU, :P].set(u_proj)
    w_cat = w_cat.at[c_mode0:c_mode0 + NM, :P].set(m_proj)
    w_cat = w_cat.at[c_time0:c_time0 + 6, :P].set(t_proj)
    w_cat = w_cat.at[c_bias_k, :P].set(b1f)

    w2p = jnp.zeros((H_pad, OUT_pad), f32)
    w2p = w2p.at[:P, :P].set(w2f)
    w2p = w2p.at[P, :P].set(b2f)                    # bias ROW (selected by h lane P)

    folded = {
        "w_cat": w_cat.astype(compute_dtype),
        "w2f": w2p.astype(compute_dtype),
    }
    meta = PrefsMeta(num_users=NU, num_modes=NM, out_dim=P,
                     k_pad=K_pad, h_pad=H_pad, out_pad=OUT_pad)
    return folded, meta


# ----------------------------------------------------------------------------
# Per-call forward: pad tiny per-row inputs + one fused pallas_call
# ----------------------------------------------------------------------------
def preferences_embedding_forward(meta, user_id, transport_mode, timestamp, folded):
    B = user_id.shape[0]
    P = meta.out_dim
    BB, B_pad = _pick_batch_block(B)
    grid = (B_pad // BB,)
    compute_dtype = folded["w_cat"].dtype

    # Narrow per-row inputs (no zero-padded 128-lane activation stream).
    ids = jnp.zeros((B_pad, 2), jnp.int32)
    ids = ids.at[:B, 0].set(user_id.astype(jnp.int32))
    ids = ids.at[:B, 1].set(transport_mode.astype(jnp.int32))
    ts = jnp.zeros((B_pad, 8), jnp.float32).at[:B, :6].set(
        timestamp.astype(jnp.float32))

    kernel = functools.partial(
        _prefs_kernel,
        meta.num_users,                       # c_mode0
        meta.num_users + meta.num_modes,      # c_time0
        meta.num_users + meta.num_modes + 6,  # c_bias_k
        P,                                    # c_bias_h
    )

    out = pl.pallas_call(
        kernel,
        out_shape=jax.ShapeDtypeStruct((B_pad, meta.out_pad), compute_dtype),
        grid=grid,
        in_specs=[
            pl.BlockSpec((BB, 2), lambda i: (i, 0)),                    # ids
            pl.BlockSpec((BB, 8), lambda i: (i, 0)),                    # timestamp
            pl.BlockSpec((meta.k_pad, meta.h_pad), lambda i: (0, 0)),   # w_cat (resident)
            pl.BlockSpec((meta.h_pad, meta.out_pad), lambda i: (0, 0)), # w2f   (resident)
        ],
        out_specs=pl.BlockSpec((BB, meta.out_pad), lambda i: (i, 0)),
        compiler_params=pltpu.CompilerParams(
            dimension_semantics=("parallel",)),
    )(ids, ts, folded["w_cat"], folded["w2f"])

    return out[:B, :P]


# ----------------------------------------------------------------------------
# Deterministic parameter init (shapes follow the PyTorch __init__)
# ----------------------------------------------------------------------------
def init_params(key, num_users, num_modes, single_dim, pref_dim):
    ks = jax.random.split(key, 8)

    def xavier(k, shape):
        fan_in, fan_out = shape[1], shape[0]
        limit = (6.0 / (fan_in + fan_out)) ** 0.5
        return jax.random.uniform(k, shape, jnp.float32, -limit, limit)

    input_dim = 3 * single_dim  # merge_method == 'cat'
    return {
        "user_table": xavier(ks[0], (num_users, single_dim)),
        "mode_table": xavier(ks[1], (num_modes, single_dim)),
        "w_time": xavier(ks[2], (single_dim, 6)),
        "b_time": jnp.zeros((single_dim,), jnp.float32),
        "w1": xavier(ks[3], (pref_dim, input_dim)),
        "b1": 0.01 * jax.random.normal(ks[4], (pref_dim,), jnp.float32),
        "w2": xavier(ks[5], (pref_dim, pref_dim)),
        "b2": 0.01 * jax.random.normal(ks[6], (pref_dim,), jnp.float32),
        # BatchNorm1d params / running stats (eval mode)
        "bn1_gamma": jnp.ones((pref_dim,), jnp.float32),
        "bn1_beta": jnp.zeros((pref_dim,), jnp.float32),
        "bn1_mean": 0.1 * jnp.ones((pref_dim,), jnp.float32),
        "bn1_var": jnp.ones((pref_dim,), jnp.float32),
        "bn2_gamma": jnp.ones((pref_dim,), jnp.float32),
        "bn2_beta": jnp.zeros((pref_dim,), jnp.float32),
        "bn2_mean": 0.05 * jnp.ones((pref_dim,), jnp.float32),
        "bn2_var": jnp.ones((pref_dim,), jnp.float32),
    }


# ----------------------------------------------------------------------------
# Pure-JAX reference for a correctness check
# ----------------------------------------------------------------------------
def reference_forward(user_id, transport_mode, timestamp, params):
    eps = 1e-5
    u = params["user_table"][user_id]
    m = params["mode_table"][transport_mode]
    t = timestamp @ params["w_time"].T + params["b_time"]
    merged = jnp.concatenate([u, m, t], axis=1)
    h = jnp.maximum(merged @ params["w1"].T + params["b1"], 0.0)
    h = (h - params["bn1_mean"]) / jnp.sqrt(params["bn1_var"] + eps) * params[
        "bn1_gamma"] + params["bn1_beta"]
    h = h @ params["w2"].T + params["b2"]
    h = (h - params["bn2_mean"]) / jnp.sqrt(params["bn2_var"] + eps) * params[
        "bn2_gamma"] + params["bn2_beta"]
    return h


if __name__ == "__main__":
    B = 8            # batch
    S = 32           # single_embedding_dim
    P = 32           # preferences_embedding_dim
    NUM_USERS = 16
    NUM_MODES = 4

    key = jax.random.PRNGKey(0)
    kp, ku, km, kt = jax.random.split(key, 4)

    params = init_params(kp, NUM_USERS, NUM_MODES, S, P)
    user_id = jax.random.randint(ku, (B,), 0, NUM_USERS, dtype=jnp.int32)
    transport_mode = jax.random.randint(km, (B,), 0, NUM_MODES, dtype=jnp.int32)
    timestamp = jax.random.normal(kt, (B, 6), jnp.float32)

    ref = reference_forward(user_id, transport_mode, timestamp, params)

    # One-time folding/padding, outside the per-call jit path (perf feedback).
    folded_f32, meta = prepare_params(params, compute_dtype=jnp.float32)
    fwd_f32 = jax.jit(functools.partial(preferences_embedding_forward, meta))
    out = jax.block_until_ready(fwd_f32(user_id, transport_mode, timestamp,
                                        folded_f32))
    assert out.shape == (B, P)
    err = float(jnp.max(jnp.abs(out - ref)))
    assert jnp.allclose(out, ref, atol=2e-4, rtol=2e-4), err

    # bf16 MXU-operand path (v5e/v6e/v7x feedback); f32 accumulation, looser tol.
    folded_bf16, meta_bf = prepare_params(params, compute_dtype=jnp.bfloat16)
    fwd_bf16 = jax.jit(functools.partial(preferences_embedding_forward, meta_bf))
    out_bf = jax.block_until_ready(
        fwd_bf16(user_id, transport_mode, timestamp, folded_bf16))
    out_bf = out_bf.astype(jnp.float32)
    assert out_bf.shape == (B, P)
    err_bf = float(jnp.max(jnp.abs(out_bf - ref)))
    assert err_bf < 5e-2, err_bf

    print("KERNEL_OK")
</pallas_src>

<mosaic_0001>
module attributes {stable_mosaic.version = 11 : i64} {
  func.func @_prefs_kernel(%arg0: i32, %arg1: memref<8x2xi32, #tpu.memory_space<vmem>>, %arg2: memref<8x8xf32, #tpu.memory_space<vmem>>, %arg3: memref<128x128xf32, #tpu.memory_space<vmem>>, %arg4: memref<128x128xf32, #tpu.memory_space<vmem>>, %arg5: memref<8x128xf32, #tpu.memory_space<vmem>>) attributes {dimension_semantics = [#tpu.dimension_semantics<parallel>], iteration_bounds = array<i64: 1>, scalar_prefetch = 0 : i64, scratch_operands = 0 : i64, tpu.core_type = #tpu.core_type<tc>, window_params = [{transform_indices = @transform_0, window_bounds = array<i64: 8, 2>}, {transform_indices = @transform_1, window_bounds = array<i64: 8, 8>}, {pipeline_mode = #tpu.pipeline_mode<synchronous>, transform_indices = @transform_2, window_bounds = array<i64: 128, 128>}, {pipeline_mode = #tpu.pipeline_mode<synchronous>, transform_indices = @transform_3, window_bounds = array<i64: 128, 128>}, {transform_indices = @transform_4, window_bounds = array<i64: 8, 128>}]} {
    %c0 = arith.constant 0 : index
    %c0_0 = arith.constant 0 : index
    %0 = vector.load %arg1[%c0, %c0_0] : memref<8x2xi32, #tpu.memory_space<vmem>>, vector<8x2xi32>
    %1 = vector.extract_strided_slice %0 {offsets = [0, 0], sizes = [8, 1], strides = [1, 1]} : vector<8x2xi32> to vector<8x1xi32>
    %2 = vector.extract_strided_slice %0 {offsets = [0, 1], sizes = [8, 1], strides = [1, 1]} : vector<8x2xi32> to vector<8x1xi32>
    %c0_1 = arith.constant 0 : index
    %c0_2 = arith.constant 0 : index
    %3 = vector.load %arg2[%c0_1, %c0_2] : memref<8x8xf32, #tpu.memory_space<vmem>>, vector<8x8xf32>
    %4 = tpu.iota {dimensions = array<i32: 1>} : vector<8x128xi32>
    %5 = vector.broadcast %1 : vector<8x1xi32> to vector<8x128xi32>
    %6 = arith.cmpi eq, %4, %5 : vector<8x128xi32>
    %7 = arith.extui %6 : vector<8x128xi1> to vector<8x128xi32>
    %8 = arith.sitofp %7 : vector<8x128xi32> to vector<8x128xf32>
    %c16_i32 = arith.constant 16 : i32
    %9 = vector.broadcast %c16_i32 : i32 to vector<8x1xi32>
    %10 = arith.addi %2, %9 : vector<8x1xi32>
    %11 = vector.broadcast %10 : vector<8x1xi32> to vector<8x128xi32>
    %12 = arith.cmpi eq, %4, %11 : vector<8x128xi32>
    %13 = arith.extui %12 : vector<8x128xi1> to vector<8x128xi32>
    %14 = arith.sitofp %13 : vector<8x128xi32> to vector<8x128xf32>
    %15 = arith.addf %8, %14 : vector<8x128xf32>
    %c26_i32 = arith.constant 26 : i32
    %16 = vector.broadcast %c26_i32 : i32 to vector<8x128xi32>
    %17 = arith.cmpi eq, %4, %16 : vector<8x128xi32>
    %18 = arith.extui %17 : vector<8x128xi1> to vector<8x128xi32>
    %19 = arith.sitofp %18 : vector<8x128xi32> to vector<8x128xf32>
    %20 = arith.addf %15, %19 : vector<8x128xf32>
    %c20_i32 = arith.constant 20 : i32
    %21 = vector.broadcast %c20_i32 : i32 to vector<8x128xi32>
    %22 = arith.cmpi eq, %4, %21 : vector<8x128xi32>
    %23 = arith.extui %22 : vector<8x128xi1> to vector<8x128xi32>
    %24 = arith.sitofp %23 : vector<8x128xi32> to vector<8x128xf32>
    %25 = vector.extract_strided_slice %3 {offsets = [0, 0], sizes = [8, 1], strides = [1, 1]} : vector<8x8xf32> to vector<8x1xf32>
    %26 = vector.broadcast %25 : vector<8x1xf32> to vector<8x128xf32>
    %27 = arith.mulf %24, %26 : vector<8x128xf32>
    %28 = arith.addf %20, %27 : vector<8x128xf32>
    %c21_i32 = arith.constant 21 : i32
    %29 = vector.broadcast %c21_i32 : i32 to vector<8x128xi32>
    %30 = arith.cmpi eq, %4, %29 : vector<8x128xi32>
    %31 = arith.extui %30 : vector<8x128xi1> to vector<8x128xi32>
    %32 = arith.sitofp %31 : vector<8x128xi32> to vector<8x128xf32>
    %33 = vector.extract_strided_slice %3 {offsets = [0, 1], sizes = [8, 1], strides = [1, 1]} : vector<8x8xf32> to vector<8x1xf32>
    %34 = vector.broadcast %33 : vector<8x1xf32> to vector<8x128xf32>
    %35 = arith.mulf %32, %34 : vector<8x128xf32>
    %36 = arith.addf %28, %35 : vector<8x128xf32>
    %c22_i32 = arith.constant 22 : i32
    %37 = vector.broadcast %c22_i32 : i32 to vector<8x128xi32>
    %38 = arith.cmpi eq, %4, %37 : vector<8x128xi32>
    %39 = arith.extui %38 : vector<8x128xi1> to vector<8x128xi32>
    %40 = arith.sitofp %39 : vector<8x128xi32> to vector<8x128xf32>
    %41 = vector.extract_strided_slice %3 {offsets = [0, 2], sizes = [8, 1], strides = [1, 1]} : vector<8x8xf32> to vector<8x1xf32>
    %42 = vector.broadcast %41 : vector<8x1xf32> to vector<8x128xf32>
    %43 = arith.mulf %40, %42 : vector<8x128xf32>
    %44 = arith.addf %36, %43 : vector<8x128xf32>
    %c23_i32 = arith.constant 23 : i32
    %45 = vector.broadcast %c23_i32 : i32 to vector<8x128xi32>
    %46 = arith.cmpi eq, %4, %45 : vector<8x128xi32>
    %47 = arith.extui %46 : vector<8x128xi1> to vector<8x128xi32>
    %48 = arith.sitofp %47 : vector<8x128xi32> to vector<8x128xf32>
    %49 = vector.extract_strided_slice %3 {offsets = [0, 3], sizes = [8, 1], strides = [1, 1]} : vector<8x8xf32> to vector<8x1xf32>
    %50 = vector.broadcast %49 : vector<8x1xf32> to vector<8x128xf32>
    %51 = arith.mulf %48, %50 : vector<8x128xf32>
    %52 = arith.addf %44, %51 : vector<8x128xf32>
    %c24_i32 = arith.constant 24 : i32
    %53 = vector.broadcast %c24_i32 : i32 to vector<8x128xi32>
    %54 = arith.cmpi eq, %4, %53 : vector<8x128xi32>
    %55 = arith.extui %54 : vector<8x128xi1> to vector<8x128xi32>
    %56 = arith.sitofp %55 : vector<8x128xi32> to vector<8x128xf32>
    %57 = vector.extract_strided_slice %3 {offsets = [0, 4], sizes = [8, 1], strides = [1, 1]} : vector<8x8xf32> to vector<8x1xf32>
    %58 = vector.broadcast %57 : vector<8x1xf32> to vector<8x128xf32>
    %59 = arith.mulf %56, %58 : vector<8x128xf32>
    %60 = arith.addf %52, %59 : vector<8x128xf32>
    %c25_i32 = arith.constant 25 : i32
    %61 = vector.broadcast %c25_i32 : i32 to vector<8x128xi32>
    %62 = arith.cmpi eq, %4, %61 : vector<8x128xi32>
    %63 = arith.extui %62 : vector<8x128xi1> to vector<8x128xi32>
    %64 = arith.sitofp %63 : vector<8x128xi32> to vector<8x128xf32>
    %65 = vector.extract_strided_slice %3 {offsets = [0, 5], sizes = [8, 1], strides = [1, 1]} : vector<8x8xf32> to vector<8x1xf32>
    %66 = vector.broadcast %65 : vector<8x1xf32> to vector<8x128xf32>
    %67 = arith.mulf %64, %66 : vector<8x128xf32>
    %68 = arith.addf %60, %67 : vector<8x128xf32>
    %c0_3 = arith.constant 0 : index
    %c0_4 = arith.constant 0 : index
    %69 = vector.load %arg3[%c0_3, %c0_4] : memref<128x128xf32, #tpu.memory_space<vmem>>, vector<128x128xf32>
    %cst = arith.constant dense<0.000000e+00> : vector<8x128xf32>
    %70 = tpu.matmul %68, %69, %cst {dimension_numbers = #tpu.dot_dimension_numbers<[1], [0], [0], [1], [0, 0, 1, 1], [], []>} : vector<8x128xf32>, vector<128x128xf32>, vector<8x128xf32> -> vector<8x128xf32>
    %cst_5 = arith.constant 0.000000e+00 : f32
    %71 = vector.broadcast %cst_5 : f32 to vector<8x128xf32>
    %72 = arith.maximumf %70, %71 : vector<8x128xf32>
    %73 = tpu.iota {dimensions = array<i32: 1>} : vector<8x128xi32>
    %c32_i32 = arith.constant 32 : i32
    %74 = vector.broadcast %c32_i32 : i32 to vector<8x128xi32>
    %75 = arith.cmpi eq, %73, %74 : vector<8x128xi32>
    %76 = arith.extui %75 : vector<8x128xi1> to vector<8x128xi32>
    %77 = arith.sitofp %76 : vector<8x128xi32> to vector<8x128xf32>
    %78 = arith.addf %72, %77 : vector<8x128xf32>
    %c0_6 = arith.constant 0 : index
    %c0_7 = arith.constant 0 : index
    %79 = vector.load %arg4[%c0_6, %c0_7] : memref<128x128xf32, #tpu.memory_space<vmem>>, vector<128x128xf32>
    %cst_8 = arith.constant dense<0.000000e+00> : vector<8x128xf32>
    %80 = tpu.matmul %78, %79, %cst_8 {dimension_numbers = #tpu.dot_dimension_numbers<[1], [0], [0], [1], [0, 0, 1, 1], [], []>} : vector<8x128xf32>, vector<128x128xf32>, vector<8x128xf32> -> vector<8x128xf32>
    %c0_9 = arith.constant 0 : index
    %c0_10 = arith.constant 0 : index
    %81 = vector.load %arg5[%c0_9, %c0_10] : memref<8x128xf32, #tpu.memory_space<vmem>>, vector<8x128xf32>
    tpu.vector_store %arg5[%c0_9, %c0_10], %80 {strides = array<i32>} : memref<8x128xf32, #tpu.memory_space<vmem>>, vector<8x128xf32>,
    return
  }
  func.func @transform_0(%arg0: i32) -> (i32, i32) {
    %c0_i32 = arith.constant 0 : i32
    %c0_i32_0 = arith.constant 0 : i32
    return %arg0, %c0_i32 : i32, i32
  }
  func.func @transform_1(%arg0: i32) -> (i32, i32) {
    %c0_i32 = arith.constant 0 : i32
    %c0_i32_0 = arith.constant 0 : i32
    return %arg0, %c0_i32 : i32, i32
  }
  func.func @transform_2(%arg0: i32) -> (i32, i32) {
    %c0_i32 = arith.constant 0 : i32
    %c0_i32_0 = arith.constant 0 : i32
    %c0_i32_1 = arith.constant 0 : i32
    return %c0_i32, %c0_i32_0 : i32, i32
  }
  func.func @transform_3(%arg0: i32) -> (i32, i32) {
    %c0_i32 = arith.constant 0 : i32
    %c0_i32_0 = arith.constant 0 : i32
    %c0_i32_1 = arith.constant 0 : i32
    return %c0_i32, %c0_i32_0 : i32, i32
  }
  func.func @transform_4(%arg0: i32) -> (i32, i32) {
    %c0_i32 = arith.constant 0 : i32
    %c0_i32_0 = arith.constant 0 : i32
    return %arg0, %c0_i32 : i32, i32
  }
}

</mosaic_0001>

<llo_original>
// kernel: preferences_embedding_forward.1
$region0: #{preferences_embedding_forward.1}
  #allocation0 [shape = 'u32[]', space=smem, size = 0x4, offset = 0x4, fixed_abs, tag = 'smem constant byte address 0x4 - core index']
  #allocation1 [shape = 'u32[144,128]{1,0:T(1,128)}', space=vmem, size = 0x12000, scoped, tag = 'internal scratch']
  %s0 = inlined_call_operand.vmem [shape: s32[8,2], index: 0, kind: input, shape index: {}]
  %s1 = inlined_call_operand.vmem [shape: f32[8,8], index: 1, kind: input, shape index: {}]
  %s2 = inlined_call_operand.hbm [shape: f32[128,128], index: 2, kind: input, shape index: {}]
  %s3 = inlined_call_operand.hbm [shape: f32[128,128], index: 3, kind: input, shape index: {}]
  %s4 = inlined_call_operand.hbm [shape: f32[8,128], index: 4, kind: output, shape index: {}]
  %s5 = sld [smem:[#allocation0]]
  $region34: #{preferences_embedding_forward.1} parent=0
    _
  %s7 = ssub.s32 1, %s5
  %s8 = scalar_select 0, %s7, %s5
  $region1: #{preferences_embedding_forward.1} parent=0
    #allocation2 [shape = 'u8[65536]{0}', space=vmem, size = 0x10000, scoped, tag = 'input window, operand 2, single buffered']
    #allocation3 [shape = 's32[1]{0}', space=sflag, size = 0x4, scoped, tag = 'scoped memory for preferences_embedding_forward.1']
    #allocation4 [shape = 's32[1]{0}', space=sflag, size = 0x4, scoped, tag = 'scoped memory for preferences_embedding_forward.1']
    #allocation5 [shape = 'u8[65536]{0}', space=vmem, size = 0x10000, scoped, tag = 'input window, operand 3, single buffered']
    #allocation6 [shape = 's32[1]{0}', space=sflag, size = 0x4, scoped, tag = 'scoped memory for preferences_embedding_forward.1']
    #allocation7 [shape = 'u8[4096]{0}', space=vmem, size = 0x1000, scoped, tag = 'output window, operand 0, single buffered']
    %9 = vsyncpa [#allocation3], 0
    %10 = vsyncpa [#allocation6], 0
    %11 = vsyncpa [#allocation4], 0
    // Predicated region
    $region2: #{preferences_embedding_forward.1} parent=1 // pred_check
      _
    $region3: #{preferences_embedding_forward.1} parent=1 // pred_check_branch
      %13 = sbr.rel (0) target = $region5
    $region4: #{preferences_embedding_forward.1} parent=1 // pred_region
      _
    $region5: #{preferences_embedding_forward.1} parent=1 // pred_fallthru
      _
    // Predicated region
    $region6: #{preferences_embedding_forward.1} parent=1 // pred_check
      _
    $region7: #{preferences_embedding_forward.1} parent=1 // pred_check_branch
      %15 = sbr.rel (0) target = $region9
    $region8: #{preferences_embedding_forward.1} parent=1 // pred_region
      _
    $region9: #{preferences_embedding_forward.1} parent=1 // pred_fallthru
      _
    // Predicated region
    $region10: #{preferences_embedding_forward.1} parent=1 // pred_check
      _
    $region11: #{preferences_embedding_forward.1} parent=1 // pred_check_branch
      %17 = sbr.rel (0) target = $region13
    $region12: #{preferences_embedding_forward.1} parent=1 // pred_region
      %s19 = ssub.s32 2048, 2048
      %20 = vsyncadd [#allocation3], %s19
      %s21 = sshll.u32 [#allocation2], 4
      %s22 = int_to_ptr.vmem [resolvable:$true] %s21
      %27 = dma.hbm_to_vmem [thread:$0]  %s2, 2048, %s22, [#allocation3], 128, 128, 8
    $region13: #{preferences_embedding_forward.1} parent=1 // pred_fallthru
      _
    // Predicated region
    $region14: #{preferences_embedding_forward.1} parent=1 // pred_check
      _
    $region15: #{preferences_embedding_forward.1} parent=1 // pred_check_branch
      %29 = sbr.rel (0) target = $region17
    $region16: #{preferences_embedding_forward.1} parent=1 // pred_region
      %s31 = ssub.s32 2048, 2048
      %32 = vsyncadd [#allocation6], %s31
      %s33 = sshll.u32 [#allocation5], 4
      %s34 = int_to_ptr.vmem [resolvable:$true] %s33
      %39 = dma.hbm_to_vmem [thread:$0]  %s3, 2048, %s34, [#allocation6], 128, 128, 8
    $region17: #{preferences_embedding_forward.1} parent=1 // pred_fallthru
      _
    // Predicated region
    $region18: #{preferences_embedding_forward.1} parent=1 // pred_check
      _
    $region19: #{preferences_embedding_forward.1} parent=1 // pred_check_branch
      %41 = sbr.rel (0) target = $region21
    $region20: #{preferences_embedding_forward.1} parent=1 // pred_region
      %42 = dma.done [#allocation3], 2048
    $region21: #{preferences_embedding_forward.1} parent=1 // pred_fallthru
      _
    // Predicated region
    $region22: #{preferences_embedding_forward.1} parent=1 // pred_check
      _
    $region23: #{preferences_embedding_forward.1} parent=1 // pred_check_branch
      %44 = sbr.rel (0) target = $region25
    $region24: #{preferences_embedding_forward.1} parent=1 // pred_region
      %45 = dma.done [#allocation6], 2048
    $region25: #{preferences_embedding_forward.1} parent=1 // pred_fallthru
      _
    %v46 = vld [vmem:[%s0] sm:$0xff]
    %v47 = vld [vmem:[%s1] sm:$0xff]
    %v48 = vlaneseq
    %v49 = vand.u32 %v48, 127
    %50 = vset.pattern.permute.xlu0 0
    %51 = vperm.xlu0 %50, %v46
    %v52 = vpop.permute.xlu0 %51
    %vm53 = vcmp.eq.s32.totalorder %v49, %v52
    %v54 = vsel %vm53, 1, 0
    %v55 = vcvt.s32.f32 %v54
    %v56 = vadd.s32 %v46, 16
    %57 = vset.pattern.permute.xlu0 1
    %58 = vperm.xlu0 %57, %v56
    %v59 = vpop.permute.xlu0 %58
    %vm60 = vcmp.eq.s32.totalorder %v49, %v59
    %v61 = vsel %vm60, 1, 0
    %v62 = vcvt.s32.f32 %v61
    %v63 = vadd.f32 %v55, %v62
    %vm64 = vcmp.eq.s32.totalorder %v49, 26
    %v65 = vsel %vm64, 1, 0
    %v66 = vcvt.s32.f32 %v65
    %v67 = vadd.f32 %v63, %v66
    %vm68 = vcmp.eq.s32.totalorder %v49, 20
    %v69 = vsel %vm68, 1, 0
    %v70 = vcvt.s32.f32 %v69
    %72 = vset.pattern.permute.xlu0 0
    %73 = vperm.xlu0 %72, %v47
    %v74 = vpop.permute.xlu0 %73
    %v76 = vmul.f32 %v70, %v74
    %v77 = vadd.f32 %v67, %v76
    %vm78 = vcmp.eq.s32.totalorder %v49, 21
    %v79 = vsel %vm78, 1, 0
    %v80 = vcvt.s32.f32 %v79
    %81 = vset.pattern.permute.xlu0 1
    %82 = vperm.xlu0 %81, %v47
    %v83 = vpop.permute.xlu0 %82
    %v85 = vmul.f32 %v80, %v83
    %v86 = vadd.f32 %v77, %v85
    %vm87 = vcmp.eq.s32.totalorder %v49, 22
    %v88 = vsel %vm87, 1, 0
    %v89 = vcvt.s32.f32 %v88
    %90 = vset.pattern.permute.xlu0 2
    %91 = vperm.xlu0 %90, %v47
    %v92 = vpop.permute.xlu0 %91
    %v94 = vmul.f32 %v89, %v92
    %v95 = vadd.f32 %v86, %v94
    %vm96 = vcmp.eq.s32.totalorder %v49, 23
    %v97 = vsel %vm96, 1, 0
    %v98 = vcvt.s32.f32 %v97
    %99 = vset.pattern.permute.xlu0 3
    %100 = vperm.xlu0 %99, %v47
    %v101 = vpop.permute.xlu0 %100
    %v103 = vmul.f32 %v98, %v101
    %v104 = vadd.f32 %v95, %v103
    %vm105 = vcmp.eq.s32.totalorder %v49, 24
    %v106 = vsel %vm105, 1, 0
    %v107 = vcvt.s32.f32 %v106
    %108 = vset.pattern.permute.xlu0 4
    %109 = vperm.xlu0 %108, %v47
    %v110 = vpop.permute.xlu0 %109
    %v112 = vmul.f32 %v107, %v110
    %v113 = vadd.f32 %v104, %v112
    %vm114 = vcmp.eq.s32.totalorder %v49, 25
    %v115 = vsel %vm114, 1, 0
    %v116 = vcvt.s32.f32 %v115
    %117 = vset.pattern.permute.xlu0 5
    %118 = vperm.xlu0 %117, %v47
    %v119 = vpop.permute.xlu0 %118
    %v121 = vmul.f32 %v116, %v119
    %v122 = vadd.f32 %v113, %v121
    %v123 = vld [vmem:[#allocation2] sm:$0xff]
    %v124 = vld [vmem:[#allocation2 + $0x8] sm:$0xff]
    %v125 = vld [vmem:[#allocation2 + $0x10] sm:$0xff]
    %v126 = vld [vmem:[#allocation2 + $0x18] sm:$0xff]
    %v127 = vld [vmem:[#allocation2 + $0x20] sm:$0xff]
    %v128 = vld [vmem:[#allocation2 + $0x28] sm:$0xff]
    %v129 = vld [vmem:[#allocation2 + $0x30] sm:$0xff]
    %v130 = vld [vmem:[#allocation2 + $0x38] sm:$0xff]
    %v131 = vld [vmem:[#allocation2 + $0x40] sm:$0xff]
    %v132 = vld [vmem:[#allocation2 + $0x48] sm:$0xff]
    %v133 = vld [vmem:[#allocation2 + $0x50] sm:$0xff]
    %v134 = vld [vmem:[#allocation2 + $0x58] sm:$0xff]
    %v135 = vld [vmem:[#allocation2 + $0x60] sm:$0xff]
    %v136 = vld [vmem:[#allocation2 + $0x68] sm:$0xff]
    %v137 = vld [vmem:[#allocation2 + $0x70] sm:$0xff]
    %v138 = vld [vmem:[#allocation2 + $0x78] sm:$0xff]
    %139 = vmatprep.subr.mxu0 0.0
    %140 = vmatpush1.msra.mxu0 %v123
    %141 = vmatprep.subr.mxu0 0.0
    %142 = vmatpush1.msra.mxu0 %v124
    %143 = vmatprep.subr.mxu0 0.0
    %144 = vmatpush1.msra.mxu0 %v125
    %145 = vmatprep.subr.mxu0 0.0
    %146 = vmatpush1.msra.mxu0 %v126
    %147 = vmatprep.subr.mxu0 0.0
    %148 = vmatpush1.msra.mxu0 %v127
    %149 = vmatprep.subr.mxu0 0.0
    %150 = vmatpush1.msra.mxu0 %v128
    %151 = vmatprep.subr.mxu0 0.0
    %152 = vmatpush1.msra.mxu0 %v129
    %153 = vmatprep.subr.mxu0 0.0
    %154 = vmatpush1.msra.mxu0 %v130
    %155 = vmatprep.subr.mxu0 0.0
    %156 = vmatpush1.msra.mxu0 %v131
    %157 = vmatprep.subr.mxu0 0.0
    %158 = vmatpush1.msra.mxu0 %v132
    %159 = vmatprep.subr.mxu0 0.0
    %160 = vmatpush1.msra.mxu0 %v133
    %161 = vmatprep.subr.mxu0 0.0
    %162 = vmatpush1.msra.mxu0 %v134
    %163 = vmatprep.subr.mxu0 0.0
    %164 = vmatpush1.msra.mxu0 %v135
    %165 = vmatprep.subr.mxu0 0.0
    %166 = vmatpush1.msra.mxu0 %v136
    %167 = vmatprep.subr.mxu0 0.0
    %168 = vmatpush1.msra.mxu0 %v137
    %169 = vmatprep.subr.mxu0 0.0
    %170 = vmatpush1.msra.mxu0 %v138
    %171 = vmatprep.subr.mxu0 0.0
    %172 = vmatpush1.msra.mxu0 0.0
    %173 = vmatprep.subr.mxu0 0.0
    %174 = vmatpush1.msra.mxu0 0.0
    %175 = vmatprep.subr.mxu0 0.0
    %176 = vmatpush1.msra.mxu0 0.0
    %177 = vmatprep.subr.mxu0 0.0
    %178 = vmatpush1.msra.mxu0 0.0
    %179 = vmatprep.subr.mxu0 0.0
    %180 = vmatpush1.msra.mxu0 0.0
    %181 = vmatprep.subr.mxu0 0.0
    %182 = vmatpush1.msra.mxu0 0.0
    %183 = vmatprep.subr.mxu0 0.0
    %184 = vmatpush1.msra.mxu0 0.0
    %185 = vmatprep.subr.mxu0 0.0
    %186 = vmatpush1.msra.mxu0 0.0
    %187 = vmatprep.subr.mxu0 0.0
    %188 = vmatpush1.msra.mxu0 0.0
    %189 = vmatprep.subr.mxu0 0.0
    %190 = vmatpush1.msra.mxu0 0.0
    %191 = vmatprep.subr.mxu0 0.0
    %192 = vmatpush1.msra.mxu0 0.0
    %193 = vmatprep.subr.mxu0 0.0
    %194 = vmatpush1.msra.mxu0 0.0
    %195 = vmatprep.subr.mxu0 0.0
    %196 = vmatpush1.msra.mxu0 0.0
    %197 = vmatprep.subr.mxu0 0.0
    %198 = vmatpush1.msra.mxu0 0.0
    %199 = vmatprep.subr.mxu0 0.0
    %200 = vmatpush1.msra.mxu0 0.0
    %201 = vmatprep.subr.mxu0 0.0
    %202 = vmatpush1.msra.mxu0 0.0
    %203 = vmatprep.mubr.f32.mxu0 0.0
    %204 = vmatmul.mubr.f32.gmra.mrb[0].mxu0 %v122
    %v205 = vpop.f32.mrb[0].mxu0
    %v206 = vadd.f32 0.0, %v205
    %v207 = vpop.f32.mrb[0].mxu0
    %208 = vdwg.mxu0
    %v209 = vmax.f32 %v206, 0.0
    %vm210 = vcmp.eq.s32.totalorder %v49, 32
    %v211 = vsel %vm210, 1, 0
    %v212 = vcvt.s32.f32 %v211
    %v213 = vadd.f32 %v209, %v212
    %v214 = vld [vmem:[#allocation5] sm:$0xff]
    %v215 = vld [vmem:[#allocation5 + $0x8] sm:$0xff]
    %v216 = vld [vmem:[#allocation5 + $0x10] sm:$0xff]
    %v217 = vld [vmem:[#allocation5 + $0x18] sm:$0xff]
    %v218 = vld [vmem:[#allocation5 + $0x20] sm:$0xff]
    %v219 = vld [vmem:[#allocation5 + $0x28] sm:$0xff]
    %v220 = vld [vmem:[#allocation5 + $0x30] sm:$0xff]
    %v221 = vld [vmem:[#allocation5 + $0x38] sm:$0xff]
    %v222 = vld [vmem:[#allocation5 + $0x40] sm:$0xff]
    %v223 = vld [vmem:[#allocation5 + $0x48] sm:$0xff]
    %v224 = vld [vmem:[#allocation5 + $0x50] sm:$0xff]
    %v225 = vld [vmem:[#allocation5 + $0x58] sm:$0xff]
    %v226 = vld [vmem:[#allocation5 + $0x60] sm:$0xff]
    %v227 = vld [vmem:[#allocation5 + $0x68] sm:$0xff]
    %v228 = vld [vmem:[#allocation5 + $0x70] sm:$0xff]
    %v229 = vld [vmem:[#allocation5 + $0x78] sm:$0xff]
    %230 = vmatprep.subr.mxu0 0.0
    %231 = vmatpush1.msra.mxu0 %v214
    %232 = vmatprep.subr.mxu0 0.0
    %233 = vmatpush1.msra.mxu0 %v215
    %234 = vmatprep.subr.mxu0 0.0
    %235 = vmatpush1.msra.mxu0 %v216
    %236 = vmatprep.subr.mxu0 0.0
    %237 = vmatpush1.msra.mxu0 %v217
    %238 = vmatprep.subr.mxu0 0.0
    %239 = vmatpush1.msra.mxu0 %v218
    %240 = vmatprep.subr.mxu0 0.0
    %241 = vmatpush1.msra.mxu0 %v219
    %242 = vmatprep.subr.mxu0 0.0
    %243 = vmatpush1.msra.mxu0 %v220
    %244 = vmatprep.subr.mxu0 0.0
    %245 = vmatpush1.msra.mxu0 %v221
    %246 = vmatprep.subr.mxu0 0.0
    %247 = vmatpush1.msra.mxu0 %v222
    %248 = vmatprep.subr.mxu0 0.0
    %249 = vmatpush1.msra.mxu0 %v223
    %250 = vmatprep.subr.mxu0 0.0
    %251 = vmatpush1.msra.mxu0 %v224
    %252 = vmatprep.subr.mxu0 0.0
    %253 = vmatpush1.msra.mxu0 %v225
    %254 = vmatprep.subr.mxu0 0.0
    %255 = vmatpush1.msra.mxu0 %v226
    %256 = vmatprep.subr.mxu0 0.0
    %257 = vmatpush1.msra.mxu0 %v227
    %258 = vmatprep.subr.mxu0 0.0
    %259 = vmatpush1.msra.mxu0 %v228
    %260 = vmatprep.subr.mxu0 0.0
    %261 = vmatpush1.msra.mxu0 %v229
    %262 = vmatprep.subr.mxu0 0.0
    %263 = vmatpush1.msra.mxu0 0.0
    %264 = vmatprep.subr.mxu0 0.0
    %265 = vmatpush1.msra.mxu0 0.0
    %266 = vmatprep.subr.mxu0 0.0
    %267 = vmatpush1.msra.mxu0 0.0
    %268 = vmatprep.subr.mxu0 0.0
    %269 = vmatpush1.msra.mxu0 0.0
    %270 = vmatprep.subr.mxu0 0.0
    %271 = vmatpush1.msra.mxu0 0.0
    %272 = vmatprep.subr.mxu0 0.0
    %273 = vmatpush1.msra.mxu0 0.0
    %274 = vmatprep.subr.mxu0 0.0
    %275 = vmatpush1.msra.mxu0 0.0
    %276 = vmatprep.subr.mxu0 0.0
    %277 = vmatpush1.msra.mxu0 0.0
    %278 = vmatprep.subr.mxu0 0.0
    %279 = vmatpush1.msra.mxu0 0.0
    %280 = vmatprep.subr.mxu0 0.0
    %281 = vmatpush1.msra.mxu0 0.0
    %282 = vmatprep.subr.mxu0 0.0
    %283 = vmatpush1.msra.mxu0 0.0
    %284 = vmatprep.subr.mxu0 0.0
    %285 = vmatpush1.msra.mxu0 0.0
    %286 = vmatprep.subr.mxu0 0.0
    %287 = vmatpush1.msra.mxu0 0.0
    %288 = vmatprep.subr.mxu0 0.0
    %289 = vmatpush1.msra.mxu0 0.0
    %290 = vmatprep.subr.mxu0 0.0
    %291 = vmatpush1.msra.mxu0 0.0
    %292 = vmatprep.subr.mxu0 0.0
    %293 = vmatpush1.msra.mxu0 0.0
    %294 = vmatprep.mubr.f32.mxu0 0.0
    %295 = vmatmul.mubr.f32.gmra.mrb[0].mxu0 %v213
    %v296 = vpop.f32.mrb[0].mxu0
    %v297 = vadd.f32 0.0, %v296
    %v298 = vpop.f32.mrb[0].mxu0
    %299 = vdwg.mxu0
    %300 = vst [vmem:[#allocation7] sm:$0xff] %v297
    // Predicated region
    $region26: #{preferences_embedding_forward.1} parent=1 // pred_check
      _
    $region27: #{preferences_embedding_forward.1} parent=1 // pred_check_branch
      %302 = sbr.rel (0) target = $region29
    $region28: #{preferences_embedding_forward.1} parent=1 // pred_region
      %s304 = ssub.s32 128, 128
      %305 = vsyncadd [#allocation4], %s304
      %s307 = sshll.u32 [#allocation7], 4
      %s308 = int_to_ptr.vmem [resolvable:$true] %s307
      %310 = dma.vmem_to_hbm [thread:$0]  %s308, 128, %s4, [#allocation4]
    $region29: #{preferences_embedding_forward.1} parent=1 // pred_fallthru
      _
    // Predicated region
    $region30: #{preferences_embedding_forward.1} parent=1 // pred_check
      _
    $region31: #{preferences_embedding_forward.1} parent=1 // pred_check_branch
      %312 = sbr.rel (0) target = $region33
    $region32: #{preferences_embedding_forward.1} parent=1 // pred_region
      %313 = dma.done [#allocation4], 128
    $region33: #{preferences_embedding_forward.1} parent=1 // pred_fallthru
      _
    %314 = vsyncpa [#allocation3], 1
    %315 = vsyncpa [#allocation6], 1
    %316 = vsyncpa [#allocation4], 1

</llo_original>
